<compile_context>
chip_gen: v5e
topology: v5e:2x2
jax: 0.10.0
libtpu: 0.0.40
codegen_flags: <defaults>
</compile_context>

<pallas_src>
import jax
import jax.numpy as jnp
from jax.experimental import pallas as pl
from jax.experimental.pallas import tpu as pltpu

# ---- hyperparameters (the PyTorch file uses a global `hidden`) -------------
HIDDEN = 32          # `hidden` global in the PyTorch source
INPUT_DIM = 16
VEHICLE_NUM = 3
RSUS_NUM = 4
LAYER_NUM = 2
BATCH = 2

PAD = 128            # lane width; every feature axis is padded to this
MAX_TILE_B = 256     # largest batch tile per grid step (multiple of 8)


def _actor_kernel(x_ref, w_ref, out_ref):
    """One batch tile: 2 MLP layers + fused heads + segmented softmax.

    x_ref : [tile_b, 128]  padded input, ones-carry column at INPUT_DIM
    w_ref : [4, 128, 128]  packed slab:
              w_ref[0] = W1 (+ b1 row, + ones-carry into h1)
              w_ref[1] = W2 (+ b2 row, + ones-carry into h2)
              w_ref[2] = fused head weights (+ fused bias row)
              w_ref[3] = block-diagonal segment-sum matrix S
    out_ref: [tile_b, 128] padded per-head softmax output
    """
    x = x_ref[...]

    # layer_1 + ReLU (bias folded into the weight slab via the ones column)
    h1 = jnp.maximum(
        jnp.dot(x, w_ref[0], preferred_element_type=jnp.float32), 0.0)

    # layer_2 + ReLU
    h2 = jnp.maximum(
        jnp.dot(h1, w_ref[1], preferred_element_type=jnp.float32), 0.0)

    # all 12 heads fused into one matmul
    logits = jnp.dot(h2, w_ref[2], preferred_element_type=jnp.float32)

    # vectorized segmented softmax:
    #   softmax within a segment is invariant to the (per-row) constant that
    #   is subtracted, so a single row-global max is exact; denom = e @ S sums
    #   e over each column's own segment (S block-diagonal; identity on padded
    #   columns so padded denominators stay nonzero -> no inf/NaN).
    m = jnp.max(logits, axis=-1, keepdims=True)
    e = jnp.exp(logits - m)
    denom = jnp.dot(e, w_ref[3], preferred_element_type=jnp.float32)
    out_ref[...] = (e * pl.reciprocal(denom, approx=False)).astype(out_ref.dtype)


def actor_forward(x, packed_w, total_out):
    """Wrapper: pad to lane-dense (8k, 128) tiles, run kernel, slice back."""
    batch, in_dim = x.shape

    # adaptive batch tile: one tile for small batches, 256-row tiles otherwise
    b8 = pl.cdiv(batch, 8) * 8
    tile_b = min(b8, MAX_TILE_B)
    b_pad = pl.cdiv(batch, tile_b) * tile_b

    x_pad = jnp.zeros((b_pad, PAD), jnp.float32)
    x_pad = x_pad.at[:batch, :in_dim].set(x.astype(jnp.float32))
    x_pad = x_pad.at[:, in_dim].set(1.0)        # bias / ones-carry column

    out = pl.pallas_call(
        _actor_kernel,
        out_shape=jax.ShapeDtypeStruct((b_pad, PAD), jnp.float32),
        grid=(b_pad // tile_b,),
        in_specs=[
            pl.BlockSpec((tile_b, PAD), lambda b: (b, 0)),
            # constant block index -> slab is fetched once, not per step
            pl.BlockSpec((4, PAD, PAD), lambda b: (0, 0, 0)),
        ],
        out_specs=pl.BlockSpec((tile_b, PAD), lambda b: (b, 0)),
        compiler_params=pltpu.CompilerParams(
            dimension_semantics=("parallel",)),
    )(x_pad, packed_w)

    return out[:batch, :total_out]


def init_params(key, input_dim, hidden, vehicle_num, rsus_num, layer_num):
    """Deterministic PyTorch-Linear-like init: U(-1/sqrt(fan_in), 1/sqrt(fan_in))."""
    def linear(k, fan_in, fan_out):
        kw, kb = jax.random.split(k)
        bound = 1.0 / jnp.sqrt(jnp.float32(fan_in))
        w = jax.random.uniform(kw, (fan_in, fan_out), jnp.float32, -bound, bound)
        b = jax.random.uniform(kb, (1, fan_out), jnp.float32, -bound, bound)
        return w, b

    keys = jax.random.split(key, 2 + 4 * vehicle_num)
    w1, b1 = linear(keys[0], input_dim, hidden)
    w2, b2 = linear(keys[1], hidden, hidden // 2)

    head_sizes, head_ws, head_bs = [], [], []
    k_idx = 2
    for _ in range(vehicle_num):
        for out_dim in (rsus_num, rsus_num, layer_num, layer_num):
            w, b = linear(keys[k_idx], hidden // 2, out_dim)
            head_ws.append(w)
            head_bs.append(b)
            head_sizes.append(out_dim)
            k_idx += 1

    # fuse all heads into one weight/bias (same concat order as PyTorch forward)
    wh = jnp.concatenate(head_ws, axis=1)
    bh = jnp.concatenate(head_bs, axis=1)

    segments, off = [], 0
    for s in head_sizes:
        segments.append((off, off + s))
        off += s

    return (w1, b1, w2, b2, wh, bh), segments


def pack_params(params, segments):
    """Fold biases into weights (ones-carry trick) and pack everything into
    one lane-aligned [4, 128, 128] slab + the segment-sum matrix."""
    w1, b1, w2, b2, wh, bh = params
    in_dim, hid = w1.shape
    h2 = w2.shape[1]
    total = wh.shape[1]

    slab = jnp.zeros((4, PAD, PAD), jnp.float32)

    # layer 1: W1 in rows [0, in_dim), b1 in row in_dim; carry 1 into h1[:, hid]
    slab = slab.at[0, :in_dim, :hid].set(w1)
    slab = slab.at[0, in_dim, :hid].set(b1[0])
    slab = slab.at[0, in_dim, hid].set(1.0)

    # layer 2: W2 in rows [0, hid), b2 in row hid; carry 1 into h2[:, h2]
    slab = slab.at[1, :hid, :h2].set(w2)
    slab = slab.at[1, hid, :h2].set(b2[0])
    slab = slab.at[1, hid, h2].set(1.0)

    # fused heads: Wh in rows [0, h2), bh in row h2
    slab = slab.at[2, :h2, :total].set(wh)
    slab = slab.at[2, h2, :total].set(bh[0])

    # segment-sum matrix S: block-diagonal over real columns, identity on
    # padded columns so padded denominators stay nonzero (no inf/NaN).
    S = jnp.zeros((PAD, PAD), jnp.float32)
    for (s, e) in segments:
        S = S.at[s:e, s:e].set(1.0)
    diag = jnp.arange(total, PAD)
    S = S.at[diag, diag].set(1.0)
    slab = slab.at[3].set(S)

    return slab


def actor_reference(x, params, segments):
    """Pure-JAX reference for correctness check."""
    w1, b1, w2, b2, wh, bh = params
    h1 = jnp.maximum(x @ w1 + b1, 0.0)
    h2 = jnp.maximum(h1 @ w2 + b2, 0.0)
    logits = h2 @ wh + bh
    parts = [jax.nn.softmax(logits[:, s:e], axis=-1) for (s, e) in segments]
    return jnp.concatenate(parts, axis=-1)


if __name__ == "__main__":
    key = jax.random.PRNGKey(0)
    k_params, k_x = jax.random.split(key)

    params, segments = init_params(
        k_params, INPUT_DIM, HIDDEN, VEHICLE_NUM, RSUS_NUM, LAYER_NUM)
    packed_w = pack_params(params, segments)

    x = jax.random.normal(k_x, (BATCH, INPUT_DIM), dtype=jnp.float32)

    total_out = VEHICLE_NUM * (2 * RSUS_NUM + 2 * LAYER_NUM)

    out = actor_forward(x, packed_w, total_out)
    out = jax.block_until_ready(out)

    ref = actor_reference(x, params, segments)
    assert out.shape == (BATCH, total_out)
    assert jnp.allclose(out, ref, atol=1e-5, rtol=1e-5)

    print("KERNEL_OK")
</pallas_src>

<mosaic_0001>
module attributes {stable_mosaic.version = 11 : i64} {
  func.func @_actor_kernel(%arg0: i32, %arg1: memref<8x128xf32, #tpu.memory_space<vmem>>, %arg2: memref<4x128x128xf32, #tpu.memory_space<vmem>>, %arg3: memref<8x128xf32, #tpu.memory_space<vmem>>) attributes {dimension_semantics = [#tpu.dimension_semantics<parallel>], iteration_bounds = array<i64: 1>, scalar_prefetch = 0 : i64, scratch_operands = 0 : i64, tpu.core_type = #tpu.core_type<tc>, window_params = [{transform_indices = @transform_0, window_bounds = array<i64: 8, 128>}, {pipeline_mode = #tpu.pipeline_mode<synchronous>, transform_indices = @transform_1, window_bounds = array<i64: 4, 128, 128>}, {transform_indices = @transform_2, window_bounds = array<i64: 8, 128>}]} {
    %c0 = arith.constant 0 : index
    %c0_0 = arith.constant 0 : index
    %0 = vector.load %arg1[%c0, %c0_0] : memref<8x128xf32, #tpu.memory_space<vmem>>, vector<8x128xf32>
    %c0_1 = arith.constant 0 : index
    %c0_2 = arith.constant 0 : index
    %c0_3 = arith.constant 0 : index
    %1 = vector.load %arg2[%c0_1, %c0_2, %c0_3] : memref<4x128x128xf32, #tpu.memory_space<vmem>>, vector<1x128x128xf32>
    %2 = vector.shape_cast %1 : vector<1x128x128xf32> to vector<128x128xf32>
    %cst = arith.constant dense<0.000000e+00> : vector<8x128xf32>
    %3 = tpu.matmul %0, %2, %cst {dimension_numbers = #tpu.dot_dimension_numbers<[1], [0], [0], [1], [0, 0, 1, 1], [], []>} : vector<8x128xf32>, vector<128x128xf32>, vector<8x128xf32> -> vector<8x128xf32>
    %cst_4 = arith.constant 0.000000e+00 : f32
    %4 = vector.broadcast %cst_4 : f32 to vector<8x128xf32>
    %5 = arith.maximumf %3, %4 : vector<8x128xf32>
    %c1 = arith.constant 1 : index
    %c0_5 = arith.constant 0 : index
    %c0_6 = arith.constant 0 : index
    %6 = vector.load %arg2[%c1, %c0_5, %c0_6] : memref<4x128x128xf32, #tpu.memory_space<vmem>>, vector<1x128x128xf32>
    %7 = vector.shape_cast %6 : vector<1x128x128xf32> to vector<128x128xf32>
    %cst_7 = arith.constant dense<0.000000e+00> : vector<8x128xf32>
    %8 = tpu.matmul %5, %7, %cst_7 {dimension_numbers = #tpu.dot_dimension_numbers<[1], [0], [0], [1], [0, 0, 1, 1], [], []>} : vector<8x128xf32>, vector<128x128xf32>, vector<8x128xf32> -> vector<8x128xf32>
    %cst_8 = arith.constant 0.000000e+00 : f32
    %9 = vector.broadcast %cst_8 : f32 to vector<8x128xf32>
    %10 = arith.maximumf %8, %9 : vector<8x128xf32>
    %c2 = arith.constant 2 : index
    %c0_9 = arith.constant 0 : index
    %c0_10 = arith.constant 0 : index
    %11 = vector.load %arg2[%c2, %c0_9, %c0_10] : memref<4x128x128xf32, #tpu.memory_space<vmem>>, vector<1x128x128xf32>
    %12 = vector.shape_cast %11 : vector<1x128x128xf32> to vector<128x128xf32>
    %cst_11 = arith.constant dense<0.000000e+00> : vector<8x128xf32>
    %13 = tpu.matmul %10, %12, %cst_11 {dimension_numbers = #tpu.dot_dimension_numbers<[1], [0], [0], [1], [0, 0, 1, 1], [], []>} : vector<8x128xf32>, vector<128x128xf32>, vector<8x128xf32> -> vector<8x128xf32>
    %cst_12 = arith.constant dense<0xFF800000> : vector<8xf32>
    %14 = vector.multi_reduction <maximumf>, %13, %cst_12 [1] : vector<8x128xf32> to vector<8xf32>
    %15 = vector.shape_cast %14 : vector<8xf32> to vector<8x1xf32>
    %16 = vector.broadcast %15 : vector<8x1xf32> to vector<8x128xf32>
    %17 = arith.subf %13, %16 : vector<8x128xf32>
    %18 = math.exp %17 : vector<8x128xf32>
    %c3 = arith.constant 3 : index
    %c0_13 = arith.constant 0 : index
    %c0_14 = arith.constant 0 : index
    %19 = vector.load %arg2[%c3, %c0_13, %c0_14] : memref<4x128x128xf32, #tpu.memory_space<vmem>>, vector<1x128x128xf32>
    %20 = vector.shape_cast %19 : vector<1x128x128xf32> to vector<128x128xf32>
    %cst_15 = arith.constant dense<0.000000e+00> : vector<8x128xf32>
    %21 = tpu.matmul %18, %20, %cst_15 {dimension_numbers = #tpu.dot_dimension_numbers<[1], [0], [0], [1], [0, 0, 1, 1], [], []>} : vector<8x128xf32>, vector<128x128xf32>, vector<8x128xf32> -> vector<8x128xf32>
    %22 = tpu.reciprocal %21 : vector<8x128xf32> -> vector<8x128xf32>
    %23 = arith.mulf %18, %22 : vector<8x128xf32>
    %c0_16 = arith.constant 0 : index
    %c0_17 = arith.constant 0 : index
    %24 = vector.load %arg3[%c0_16, %c0_17] : memref<8x128xf32, #tpu.memory_space<vmem>>, vector<8x128xf32>
    tpu.vector_store %arg3[%c0_16, %c0_17], %23 {strides = array<i32>} : memref<8x128xf32, #tpu.memory_space<vmem>>, vector<8x128xf32>,
    return
  }
  func.func @transform_0(%arg0: i32) -> (i32, i32) {
    %c0_i32 = arith.constant 0 : i32
    %c0_i32_0 = arith.constant 0 : i32
    return %arg0, %c0_i32 : i32, i32
  }
  func.func @transform_1(%arg0: i32) -> (i32, i32, i32) {
    %c0_i32 = arith.constant 0 : i32
    %c0_i32_0 = arith.constant 0 : i32
    %c0_i32_1 = arith.constant 0 : i32
    %c0_i32_2 = arith.constant 0 : i32
    return %c0_i32, %c0_i32_0, %c0_i32_1 : i32, i32, i32
  }
  func.func @transform_2(%arg0: i32) -> (i32, i32) {
    %c0_i32 = arith.constant 0 : i32
    %c0_i32_0 = arith.constant 0 : i32
    return %arg0, %c0_i32 : i32, i32
  }
}

</mosaic_0001>

<llo_original>
// kernel: tpu_custom_call.1
$region0: #{tpu_custom_call.1}
  #allocation0 [shape = 'u32[]', space=smem, size = 0x4, offset = 0x4, fixed_abs, tag = 'smem constant byte address 0x4 - core index']
  #allocation1 [shape = 'u32[72,128]{1,0:T(1,128)}', space=vmem, size = 0x9000, scoped, tag = 'internal scratch']
  %s0 = inlined_call_operand.hbm [shape: f32[8,128], index: 0, kind: input, shape index: {}]
  %s1 = inlined_call_operand.hbm [shape: f32[4,128,128], index: 1, kind: input, shape index: {}]
  %s2 = inlined_call_operand.hbm [shape: f32[8,128], index: 2, kind: output, shape index: {}]
  %s3 = sld [smem:[#allocation0]]
  $region26: #{tpu_custom_call.1} parent=0
    _
  %s5 = ssub.s32 1, %s3
  %s6 = scalar_select 0, %s5, %s3
  $region1: #{tpu_custom_call.1} parent=0
    #allocation2 [shape = 'u8[4096]{0}', space=vmem, size = 0x1000, scoped, tag = 'input window, operand 0, single buffered']
    #allocation3 [shape = 's32[1]{0}', space=sflag, size = 0x4, scoped, tag = 'scoped memory for tpu_custom_call.1']
    #allocation4 [shape = 's32[1]{0}', space=sflag, size = 0x4, scoped, tag = 'scoped memory for tpu_custom_call.1']
    #allocation5 [shape = 'u8[262144]{0}', space=vmem, size = 0x40000, scoped, tag = 'input window, operand 1, single buffered']
    #allocation6 [shape = 's32[1]{0}', space=sflag, size = 0x4, scoped, tag = 'scoped memory for tpu_custom_call.1']
    #allocation7 [shape = 'u8[4096]{0}', space=vmem, size = 0x1000, scoped, tag = 'output window, operand 0, single buffered']
    %7 = vsyncpa [#allocation3], 0
    %8 = vsyncpa [#allocation6], 0
    %9 = vsyncpa [#allocation4], 0
    // Predicated region
    $region2: #{tpu_custom_call.1} parent=1 // pred_check
      _
    $region3: #{tpu_custom_call.1} parent=1 // pred_check_branch
      %11 = sbr.rel (0) target = $region5
    $region4: #{tpu_custom_call.1} parent=1 // pred_region
      %13 = vsyncadd [#allocation3], 0
      %s15 = sshll.u32 %s0, 4
      %s16 = int_to_ptr.hbm [resolvable:$true] %s15
      %s17 = sshll.u32 [#allocation2], 4
      %s18 = int_to_ptr.vmem [resolvable:$true] %s17
      %20 = dma.hbm_to_vmem [thread:$0]  %s16, 128, %s18, [#allocation3]
    $region5: #{tpu_custom_call.1} parent=1 // pred_fallthru
      _
    // Predicated region
    $region6: #{tpu_custom_call.1} parent=1 // pred_check
      _
    $region7: #{tpu_custom_call.1} parent=1 // pred_check_branch
      %22 = sbr.rel (0) target = $region9
    $region8: #{tpu_custom_call.1} parent=1 // pred_region
      %24 = vsyncadd [#allocation6], 0
      %s25 = sshll.u32 %s1, 4
      %s26 = int_to_ptr.hbm [resolvable:$true] %s25
      %s27 = sshll.u32 [#allocation5], 4
      %s28 = int_to_ptr.vmem [resolvable:$true] %s27
      %33 = dma.hbm_to_vmem [thread:$0]  %s26, 8192, %s28, [#allocation6], 128, 128, 8
    $region9: #{tpu_custom_call.1} parent=1 // pred_fallthru
      _
    // Predicated region
    $region10: #{tpu_custom_call.1} parent=1 // pred_check
      _
    $region11: #{tpu_custom_call.1} parent=1 // pred_check_branch
      %35 = sbr.rel (0) target = $region13
    $region12: #{tpu_custom_call.1} parent=1 // pred_region
      %37 = dma.done [#allocation3], 128
    $region13: #{tpu_custom_call.1} parent=1 // pred_fallthru
      _
    // Predicated region
    $region14: #{tpu_custom_call.1} parent=1 // pred_check
      _
    $region15: #{tpu_custom_call.1} parent=1 // pred_check_branch
      %39 = sbr.rel (0) target = $region17
    $region16: #{tpu_custom_call.1} parent=1 // pred_region
      %41 = dma.done [#allocation6], 8192
    $region17: #{tpu_custom_call.1} parent=1 // pred_fallthru
      _
    %v42 = vld [vmem:[#allocation2] sm:$0xff]
    %v43 = vld [vmem:[#allocation5] sm:$0xff]
    %v44 = vld [vmem:[#allocation5 + $0x8] sm:$0xff]
    %v45 = vld [vmem:[#allocation5 + $0x10] sm:$0xff]
    %v46 = vld [vmem:[#allocation5 + $0x18] sm:$0xff]
    %v47 = vld [vmem:[#allocation5 + $0x20] sm:$0xff]
    %v48 = vld [vmem:[#allocation5 + $0x28] sm:$0xff]
    %v49 = vld [vmem:[#allocation5 + $0x30] sm:$0xff]
    %v50 = vld [vmem:[#allocation5 + $0x38] sm:$0xff]
    %v51 = vld [vmem:[#allocation5 + $0x40] sm:$0xff]
    %v52 = vld [vmem:[#allocation5 + $0x48] sm:$0xff]
    %v53 = vld [vmem:[#allocation5 + $0x50] sm:$0xff]
    %v54 = vld [vmem:[#allocation5 + $0x58] sm:$0xff]
    %v55 = vld [vmem:[#allocation5 + $0x60] sm:$0xff]
    %v56 = vld [vmem:[#allocation5 + $0x68] sm:$0xff]
    %v57 = vld [vmem:[#allocation5 + $0x70] sm:$0xff]
    %v58 = vld [vmem:[#allocation5 + $0x78] sm:$0xff]
    %59 = vmatpush.msra.mxu0 %v58
    %60 = vmatpush.msra.mxu0 %v57
    %61 = vmatpush.msra.mxu0 %v56
    %62 = vmatpush.msra.mxu0 %v55
    %63 = vmatpush.msra.mxu0 %v54
    %64 = vmatpush.msra.mxu0 %v53
    %65 = vmatpush.msra.mxu0 %v52
    %66 = vmatpush.msra.mxu0 %v51
    %67 = vmatpush.msra.mxu0 %v50
    %68 = vmatpush.msra.mxu0 %v49
    %69 = vmatpush.msra.mxu0 %v48
    %70 = vmatpush.msra.mxu0 %v47
    %71 = vmatpush.msra.mxu0 %v46
    %72 = vmatpush.msra.mxu0 %v45
    %73 = vmatpush.msra.mxu0 %v44
    %74 = vmatpush.msra.mxu0 %v43
    %75 = vmatmul.f32.gmra.mxu0 %v42
    %v76 = vpop.f32.mrf.mxu0
    %v77 = vadd.f32 0.0, %v76
    %78 = vdwg.mxu0
    %v79 = vmax.f32 %v77, 0.0
    %s80 = scalar_lea.vmem [#allocation5], 128
    %v81 = vld [vmem:[%s80] sm:$0xff]
    %v82 = vld [vmem:[%s80 + $0x8] sm:$0xff]
    %v83 = vld [vmem:[%s80 + $0x10] sm:$0xff]
    %v84 = vld [vmem:[%s80 + $0x18] sm:$0xff]
    %v85 = vld [vmem:[%s80 + $0x20] sm:$0xff]
    %v86 = vld [vmem:[%s80 + $0x28] sm:$0xff]
    %v87 = vld [vmem:[%s80 + $0x30] sm:$0xff]
    %v88 = vld [vmem:[%s80 + $0x38] sm:$0xff]
    %v89 = vld [vmem:[%s80 + $0x40] sm:$0xff]
    %v90 = vld [vmem:[%s80 + $0x48] sm:$0xff]
    %v91 = vld [vmem:[%s80 + $0x50] sm:$0xff]
    %v92 = vld [vmem:[%s80 + $0x58] sm:$0xff]
    %v93 = vld [vmem:[%s80 + $0x60] sm:$0xff]
    %v94 = vld [vmem:[%s80 + $0x68] sm:$0xff]
    %v95 = vld [vmem:[%s80 + $0x70] sm:$0xff]
    %v96 = vld [vmem:[%s80 + $0x78] sm:$0xff]
    %97 = vmatpush.msra.mxu0 %v96
    %98 = vmatpush.msra.mxu0 %v95
    %99 = vmatpush.msra.mxu0 %v94
    %100 = vmatpush.msra.mxu0 %v93
    %101 = vmatpush.msra.mxu0 %v92
    %102 = vmatpush.msra.mxu0 %v91
    %103 = vmatpush.msra.mxu0 %v90
    %104 = vmatpush.msra.mxu0 %v89
    %105 = vmatpush.msra.mxu0 %v88
    %106 = vmatpush.msra.mxu0 %v87
    %107 = vmatpush.msra.mxu0 %v86
    %108 = vmatpush.msra.mxu0 %v85
    %109 = vmatpush.msra.mxu0 %v84
    %110 = vmatpush.msra.mxu0 %v83
    %111 = vmatpush.msra.mxu0 %v82
    %112 = vmatpush.msra.mxu0 %v81
    %113 = vmatmul.f32.gmra.mxu0 %v79
    %v114 = vpop.f32.mrf.mxu0
    %v115 = vadd.f32 0.0, %v114
    %116 = vdwg.mxu0
    %v117 = vmax.f32 %v115, 0.0
    %s118 = scalar_lea.vmem [#allocation5], 256
    %v119 = vld [vmem:[%s118] sm:$0xff]
    %v120 = vld [vmem:[%s118 + $0x8] sm:$0xff]
    %v121 = vld [vmem:[%s118 + $0x10] sm:$0xff]
    %v122 = vld [vmem:[%s118 + $0x18] sm:$0xff]
    %v123 = vld [vmem:[%s118 + $0x20] sm:$0xff]
    %v124 = vld [vmem:[%s118 + $0x28] sm:$0xff]
    %v125 = vld [vmem:[%s118 + $0x30] sm:$0xff]
    %v126 = vld [vmem:[%s118 + $0x38] sm:$0xff]
    %v127 = vld [vmem:[%s118 + $0x40] sm:$0xff]
    %v128 = vld [vmem:[%s118 + $0x48] sm:$0xff]
    %v129 = vld [vmem:[%s118 + $0x50] sm:$0xff]
    %v130 = vld [vmem:[%s118 + $0x58] sm:$0xff]
    %v131 = vld [vmem:[%s118 + $0x60] sm:$0xff]
    %v132 = vld [vmem:[%s118 + $0x68] sm:$0xff]
    %v133 = vld [vmem:[%s118 + $0x70] sm:$0xff]
    %v134 = vld [vmem:[%s118 + $0x78] sm:$0xff]
    %135 = vmatpush.msra.mxu0 %v134
    %136 = vmatpush.msra.mxu0 %v133
    %137 = vmatpush.msra.mxu0 %v132
    %138 = vmatpush.msra.mxu0 %v131
    %139 = vmatpush.msra.mxu0 %v130
    %140 = vmatpush.msra.mxu0 %v129
    %141 = vmatpush.msra.mxu0 %v128
    %142 = vmatpush.msra.mxu0 %v127
    %143 = vmatpush.msra.mxu0 %v126
    %144 = vmatpush.msra.mxu0 %v125
    %145 = vmatpush.msra.mxu0 %v124
    %146 = vmatpush.msra.mxu0 %v123
    %147 = vmatpush.msra.mxu0 %v122
    %148 = vmatpush.msra.mxu0 %v121
    %149 = vmatpush.msra.mxu0 %v120
    %150 = vmatpush.msra.mxu0 %v119
    %151 = vmatmul.f32.gmra.mxu0 %v117
    %v152 = vpop.f32.mrf.mxu0
    %v153 = vadd.f32 0.0, %v152
    %154 = vdwg.mxu0
    %155 = vmax.xlane.f32.xlu0 %v153
    %v156 = vpop.xlane.xlu0 %155
    %v157 = vsub.f32 %v153, %v156
    %v158 = vmul.f32 %v157, 1.442695
    %v159 = vpow.pop %v158
    %s160 = scalar_lea.vmem [#allocation5], 384
    %v161 = vld [vmem:[%s160] sm:$0xff]
    %v162 = vld [vmem:[%s160 + $0x8] sm:$0xff]
    %v163 = vld [vmem:[%s160 + $0x10] sm:$0xff]
    %v164 = vld [vmem:[%s160 + $0x18] sm:$0xff]
    %v165 = vld [vmem:[%s160 + $0x20] sm:$0xff]
    %v166 = vld [vmem:[%s160 + $0x28] sm:$0xff]
    %v167 = vld [vmem:[%s160 + $0x30] sm:$0xff]
    %v168 = vld [vmem:[%s160 + $0x38] sm:$0xff]
    %v169 = vld [vmem:[%s160 + $0x40] sm:$0xff]
    %v170 = vld [vmem:[%s160 + $0x48] sm:$0xff]
    %v171 = vld [vmem:[%s160 + $0x50] sm:$0xff]
    %v172 = vld [vmem:[%s160 + $0x58] sm:$0xff]
    %v173 = vld [vmem:[%s160 + $0x60] sm:$0xff]
    %v174 = vld [vmem:[%s160 + $0x68] sm:$0xff]
    %v175 = vld [vmem:[%s160 + $0x70] sm:$0xff]
    %v176 = vld [vmem:[%s160 + $0x78] sm:$0xff]
    %177 = vmatpush.msra.mxu0 %v176
    %178 = vmatpush.msra.mxu0 %v175
    %179 = vmatpush.msra.mxu0 %v174
    %180 = vmatpush.msra.mxu0 %v173
    %181 = vmatpush.msra.mxu0 %v172
    %182 = vmatpush.msra.mxu0 %v171
    %183 = vmatpush.msra.mxu0 %v170
    %184 = vmatpush.msra.mxu0 %v169
    %185 = vmatpush.msra.mxu0 %v168
    %186 = vmatpush.msra.mxu0 %v167
    %187 = vmatpush.msra.mxu0 %v166
    %188 = vmatpush.msra.mxu0 %v165
    %189 = vmatpush.msra.mxu0 %v164
    %190 = vmatpush.msra.mxu0 %v163
    %191 = vmatpush.msra.mxu0 %v162
    %192 = vmatpush.msra.mxu0 %v161
    %193 = vmatmul.f32.gmra.mxu0 %v159
    %v194 = vpop.f32.mrf.mxu0
    %v195 = vadd.f32 0.0, %v194
    %196 = vdwg.mxu0
    %v197 = vrcp.pop %v195
    %v198 = vmul.f32 %v195, %v197
    %v199 = vsub.f32 1.0, %v198
    %v200 = vmul.f32 %v197, %v199
    %v201 = vadd.f32 %v197, %v200
    %vm202 = vweird.f32 %v195
    %vm203 = vweird.f32 %v197
    %vm204 = vmor %vm202, %vm203
    %v205 = vsel %vm204, %v197, %v201
    %v206 = vand.u32 2147483647, %v195
    %vm207 = vcmp.eq.f32.partialorder %v206, 8.507059e+37
    %v208 = vand.u32 %v195, 2147483648
    %v209 = vor.u32 1.1754944e-38, %v208
    %v210 = vsel %vm207, %v209, %v205
    %v211 = vmul.f32 %v159, %v210
    %212 = vst [vmem:[#allocation7] sm:$0xff] %v211
    // Predicated region
    $region18: #{tpu_custom_call.1} parent=1 // pred_check
      _
    $region19: #{tpu_custom_call.1} parent=1 // pred_check_branch
      %214 = sbr.rel (0) target = $region21
    $region20: #{tpu_custom_call.1} parent=1 // pred_region
      %216 = vsyncadd [#allocation4], 0
      %s218 = sshll.u32 [#allocation7], 4
      %s219 = int_to_ptr.vmem [resolvable:$true] %s218
      %s220 = sshll.u32 %s2, 4
      %s221 = int_to_ptr.hbm [resolvable:$true] %s220
      %223 = dma.vmem_to_hbm [thread:$0]  %s219, 128, %s221, [#allocation4]
    $region21: #{tpu_custom_call.1} parent=1 // pred_fallthru
      _
    // Predicated region
    $region22: #{tpu_custom_call.1} parent=1 // pred_check
      _
    $region23: #{tpu_custom_call.1} parent=1 // pred_check_branch
      %225 = sbr.rel (0) target = $region25
    $region24: #{tpu_custom_call.1} parent=1 // pred_region
      %227 = dma.done [#allocation4], 128
    $region25: #{tpu_custom_call.1} parent=1 // pred_fallthru
      _
    %228 = vsyncpa [#allocation3], 1
    %229 = vsyncpa [#allocation6], 1
    %230 = vsyncpa [#allocation4], 1

</llo_original>
